<compile_context>
chip_gen: v6e
topology: v6e:2x2x1
jax: 0.10.0
libtpu: 0.0.40
codegen_flags: <defaults>
</compile_context>

<pallas_src>
import functools

import jax
import jax.numpy as jnp
from jax.experimental import pallas as pl
from jax.experimental.pallas import tpu as pltpu


def _fused_double_conv_kernel(x_ref, w1_ref, b1_ref, w2_ref, b2_ref, o_ref,
                              p1_ref, mid_ref, p2_ref, *, H, W):
    """One batch element, both conv stages fused.

    x_ref:   (Cin, (H+4)*W)  bf16  flattened image, 2 zero pad rows top & bottom
    w1_ref:  (Cmid, 9*Cin)   bf16  BN1 scale folded in, tap-major columns
    b1_ref:  (Cmid, 1)       f32   folded BN1 bias
    w2_ref:  (Cout, 9*Cmid)  bf16  BN2 scale folded in
    b2_ref:  (Cout, 1)       f32   folded BN2 bias
    o_ref:   (Cout, H*W)     f32   lane-dense output (H*W lanes)
    p1_ref:  (9*Cin, H*W)    bf16  scratch: conv1 im2col patches
    mid_ref: (Cmid, (H+4)*W) bf16  scratch: padded mid activation (VMEM only)
    p2_ref:  (9*Cmid, H*W)   bf16  scratch: conv2 im2col patches
    """
    HW = H * W
    # Column index within each image row, laid out along the lane dim.
    col = jax.lax.broadcasted_iota(jnp.int32, (1, HW), 1) % W
    m_left = (col != 0).astype(jnp.bfloat16)       # kx==0 taps: x-1 invalid at x==0
    m_right = (col != W - 1).astype(jnp.bfloat16)  # kx==2 taps: x+1 invalid at x==W-1

    def im2col(src_ref, cin, patches_ref):
        # src_ref is a flat (cin, (H+4)*W) image with 2 zero pad rows on top
        # and bottom.  For output pixel o = y*W + x, tap (ky, kx) reads flat
        # index o + (ky+1)*W + (kx-1); the horizontal wrap-around values are
        # masked to zero (they correspond to the 'same'-padding columns).
        for ky in range(3):
            for kx in range(3):
                start = (ky + 1) * W + (kx - 1)
                p = src_ref[:, start:start + HW]
                if kx == 0:
                    p = p * m_left
                elif kx == 2:
                    p = p * m_right
                t = ky * 3 + kx
                patches_ref[t * cin:(t + 1) * cin, :] = p

    cin = x_ref.shape[0]
    cmid = mid_ref.shape[0]

    # ---- conv1 (+ folded BN1) + ReLU : one (Cmid, 9*Cin) @ (9*Cin, HW) ----
    im2col(x_ref, cin, p1_ref)
    a1 = jnp.dot(w1_ref[...], p1_ref[...], preferred_element_type=jnp.float32)
    a1 = jnp.maximum(a1 + b1_ref[...], 0.0)

    # Mid activation stays on-chip: write it (with its zero pad rows) to VMEM.
    mid_ref[...] = jnp.zeros_like(mid_ref)
    mid_ref[:, 2 * W:2 * W + HW] = a1.astype(mid_ref.dtype)

    # ---- conv2 (+ folded BN2) + ReLU : one (Cout, 9*Cmid) @ (9*Cmid, HW) ----
    im2col(mid_ref, cmid, p2_ref)
    a2 = jnp.dot(w2_ref[...], p2_ref[...], preferred_element_type=jnp.float32)
    a2 = jnp.maximum(a2 + b2_ref[...], 0.0)
    o_ref[...] = a2.astype(o_ref.dtype)


def double_conv(x_nchw, kparams):
    """Forward pass matching DoubleConv.forward (NCHW in / NCHW out)."""
    w1, b1, w2, b2 = kparams["w1"], kparams["b1"], kparams["w2"], kparams["b2"]
    B, Cin, H, W = x_nchw.shape
    Cmid = w1.shape[0]
    Cout = w2.shape[0]
    HW = H * W
    L = (H + 4) * W

    # Single pad for the whole fused double conv: 2 zero rows above/below,
    # then flatten the spatial dims and cast to bf16 (halves HBM bytes).
    x_pad = jnp.pad(x_nchw, ((0, 0), (0, 0), (2, 2), (0, 0)))
    x_flat = x_pad.reshape(B, Cin, L).astype(jnp.bfloat16)

    kernel = functools.partial(_fused_double_conv_kernel, H=H, W=W)
    out_flat = pl.pallas_call(
        kernel,
        out_shape=jax.ShapeDtypeStruct((B, Cout, HW), jnp.float32),
        grid=(B,),
        in_specs=[
            pl.BlockSpec((None, Cin, L), lambda b: (b, 0, 0)),
            pl.BlockSpec((Cmid, 9 * Cin), lambda b: (0, 0)),
            pl.BlockSpec((Cmid, 1), lambda b: (0, 0)),
            pl.BlockSpec((Cout, 9 * Cmid), lambda b: (0, 0)),
            pl.BlockSpec((Cout, 1), lambda b: (0, 0)),
        ],
        out_specs=pl.BlockSpec((None, Cout, HW), lambda b: (b, 0, 0)),
        scratch_shapes=[
            pltpu.VMEM((9 * Cin, HW), jnp.bfloat16),   # conv1 patches
            pltpu.VMEM((Cmid, L), jnp.bfloat16),       # padded mid activation
            pltpu.VMEM((9 * Cmid, HW), jnp.bfloat16),  # conv2 patches
        ],
        compiler_params=pltpu.CompilerParams(
            dimension_semantics=("parallel",)),
    )(x_flat, w1, b1, w2, b2)
    return out_flat.reshape(B, Cout, H, W)


# ---------------- parameter construction / host-side folding ----------------
def make_double_conv_params(key, in_channels, out_channels, mid_channels=None):
    """Random PyTorch-layout parameters (conv OIHW weights + BN statistics)."""
    if not mid_channels:
        mid_channels = out_channels
    ks = jax.random.split(key, 10)

    def conv_w(k, cin, cout):
        return jax.random.normal(k, (cout, cin, 3, 3), jnp.float32) * 0.1

    def bn(kg, kb, km, kv, c):
        gamma = 1.0 + 0.1 * jax.random.normal(kg, (c,), jnp.float32)
        beta = 0.1 * jax.random.normal(kb, (c,), jnp.float32)
        mean = 0.1 * jax.random.normal(km, (c,), jnp.float32)
        var = jnp.abs(jax.random.normal(kv, (c,), jnp.float32)) + 0.5
        return gamma, beta, mean, var

    return dict(
        w1=conv_w(ks[0], in_channels, mid_channels),
        bn1=bn(ks[1], ks[2], ks[3], ks[4], mid_channels),
        w2=conv_w(ks[5], mid_channels, out_channels),
        bn2=bn(ks[6], ks[7], ks[8], ks[9], out_channels),
    )


def fold_bn(w_oihw, gamma, beta, mean, var, eps=1e-5):
    """Fold inference-mode BN into the conv: scaled OIHW weight + bias."""
    scale = gamma / jnp.sqrt(var + eps)
    return w_oihw * scale[:, None, None, None], beta - mean * scale


def prepare_kernel_params(params, eps=1e-5):
    """Fold BN scale into weights, permute to tap-major (C, 9*Cin), cast bf16."""
    def prep(w_oihw, bn_stats):
        w_scaled, bias = fold_bn(w_oihw, *bn_stats, eps=eps)
        cout, cin = w_scaled.shape[:2]
        # (Cout, Cin, 3, 3) -> (Cout, 3, 3, Cin) -> (Cout, 9*Cin); column index
        # is (ky*3 + kx)*Cin + ci, matching the kernel's im2col row order.
        wf = jnp.transpose(w_scaled, (0, 2, 3, 1)).reshape(cout, 9 * cin)
        return wf.astype(jnp.bfloat16), bias.reshape(cout, 1).astype(jnp.float32)

    w1, b1 = prep(params["w1"], params["bn1"])
    w2, b2 = prep(params["w2"], params["bn2"])
    return dict(w1=w1, b1=b1, w2=w2, b2=b2)


# ---------------- plain-JAX reference (bf16-quantization matched) -----------
def _ref_double_conv(x_nchw, params, eps=1e-5):
    def conv_bn_relu(h, w_oihw, bn_stats):
        w_scaled, bias = fold_bn(w_oihw, *bn_stats, eps=eps)
        wq = w_scaled.astype(jnp.bfloat16).astype(jnp.float32)
        y = jax.lax.conv_general_dilated(
            h, wq, window_strides=(1, 1), padding="SAME",
            dimension_numbers=("NCHW", "OIHW", "NCHW"))
        return jnp.maximum(y + bias[None, :, None, None], 0.0)

    xq = x_nchw.astype(jnp.bfloat16).astype(jnp.float32)
    y1 = conv_bn_relu(xq, params["w1"], params["bn1"])
    y1q = y1.astype(jnp.bfloat16).astype(jnp.float32)
    return conv_bn_relu(y1q, params["w2"], params["bn2"])


if __name__ == "__main__":
    key = jax.random.PRNGKey(0)
    kx, kp = jax.random.split(key)

    B, Cin, Cout, H, W = 2, 4, 8, 16, 16
    x = jax.random.normal(kx, (B, Cin, H, W), jnp.float32)  # NCHW like PyTorch
    params = make_double_conv_params(kp, Cin, Cout)
    kparams = prepare_kernel_params(params)

    out = jax.block_until_ready(jax.jit(double_conv)(x, kparams))
    assert out.shape == (B, Cout, H, W), out.shape

    ref = jax.block_until_ready(_ref_double_conv(x, params))
    max_err = float(jnp.max(jnp.abs(out - ref)))
    assert jnp.allclose(out, ref, rtol=5e-3, atol=5e-3), max_err

    print("KERNEL_OK")
</pallas_src>

<mosaic_0001>
module attributes {stable_mosaic.version = 11 : i64} {
  func.func @_fused_double_conv_kernel(%arg0: i32, %arg1: memref<1x4x320xbf16, #tpu.memory_space<vmem>>, %arg2: memref<8x36xbf16, #tpu.memory_space<vmem>>, %arg3: memref<8x1xf32, #tpu.memory_space<vmem>>, %arg4: memref<8x72xbf16, #tpu.memory_space<vmem>>, %arg5: memref<8x1xf32, #tpu.memory_space<vmem>>, %arg6: memref<1x8x256xf32, #tpu.memory_space<vmem>>, %arg7: memref<36x256xbf16, #tpu.memory_space<vmem>>, %arg8: memref<8x320xbf16, #tpu.memory_space<vmem>>, %arg9: memref<72x256xbf16, #tpu.memory_space<vmem>>) attributes {dimension_semantics = [#tpu.dimension_semantics<parallel>], iteration_bounds = array<i64: 2>, scalar_prefetch = 0 : i64, scratch_operands = 3 : i64, tpu.core_type = #tpu.core_type<tc>, window_params = [{transform_indices = @transform_0, window_bounds = array<i64: 1, 4, 320>}, {pipeline_mode = #tpu.pipeline_mode<synchronous>, transform_indices = @transform_1, window_bounds = array<i64: 8, 36>}, {pipeline_mode = #tpu.pipeline_mode<synchronous>, transform_indices = @transform_2, window_bounds = array<i64: 8, 1>}, {pipeline_mode = #tpu.pipeline_mode<synchronous>, transform_indices = @transform_3, window_bounds = array<i64: 8, 72>}, {pipeline_mode = #tpu.pipeline_mode<synchronous>, transform_indices = @transform_4, window_bounds = array<i64: 8, 1>}, {transform_indices = @transform_5, window_bounds = array<i64: 1, 8, 256>}]} {
    %0 = tpu.iota {dimensions = array<i32: 1>} : vector<1x256xi32>
    %c16_i32 = arith.constant 16 : i32
    %c0_i32 = arith.constant 0 : i32
    %1 = arith.cmpi eq, %c16_i32, %c0_i32 : i32
    %c1_i32 = arith.constant 1 : i32
    %2 = arith.select %1, %c1_i32, %c16_i32 : i32
    %3 = vector.broadcast %2 : i32 to vector<1x256xi32>
    %4 = arith.remsi %0, %3 : vector<1x256xi32>
    %c0_i32_0 = arith.constant 0 : i32
    %5 = vector.broadcast %c0_i32_0 : i32 to vector<1x256xi32>
    %6 = arith.cmpi ne, %4, %5 : vector<1x256xi32>
    %c0_i32_1 = arith.constant 0 : i32
    %7 = vector.broadcast %c0_i32_1 : i32 to vector<1x256xi32>
    %8 = arith.cmpi slt, %4, %7 : vector<1x256xi32>
    %c0_i32_2 = arith.constant 0 : i32
    %9 = arith.cmpi slt, %2, %c0_i32_2 : i32
    %10 = vector.broadcast %9 : i1 to vector<1x256xi1>
    %11 = vector.broadcast %10 : vector<1x256xi1> to vector<1x256xi1>
    %12 = arith.xori %8, %11 : vector<1x256xi1>
    %13 = arith.andi %12, %6 : vector<1x256xi1>
    %14 = vector.broadcast %2 : i32 to vector<1x256xi32>
    %15 = arith.addi %4, %14 : vector<1x256xi32>
    %16 = arith.select %13, %15, %4 : vector<1x256xi1>, vector<1x256xi32>
    %c0_i32_3 = arith.constant 0 : i32
    %17 = vector.broadcast %c0_i32_3 : i32 to vector<1x256xi32>
    %18 = arith.cmpi ne, %16, %17 : vector<1x256xi32>
    %19 = arith.extui %18 : vector<1x256xi1> to vector<1x256xi32>
    %20 = arith.sitofp %19 : vector<1x256xi32> to vector<1x256xf32>
    %21 = arith.truncf %20 : vector<1x256xf32> to vector<1x256xbf16>
    %c15_i32 = arith.constant 15 : i32
    %22 = vector.broadcast %c15_i32 : i32 to vector<1x256xi32>
    %23 = arith.cmpi ne, %16, %22 : vector<1x256xi32>
    %24 = arith.extui %23 : vector<1x256xi1> to vector<1x256xi32>
    %25 = arith.sitofp %24 : vector<1x256xi32> to vector<1x256xf32>
    %26 = arith.truncf %25 : vector<1x256xf32> to vector<1x256xbf16>
    %c0 = arith.constant 0 : index
    %c0_4 = arith.constant 0 : index
    %c15 = arith.constant 15 : index
    %27 = vector.load %arg1[%c0, %c0_4, %c15] : memref<1x4x320xbf16, #tpu.memory_space<vmem>>, vector<1x4x256xbf16>
    %28 = vector.shape_cast %27 : vector<1x4x256xbf16> to vector<4x256xbf16>
    %29 = vector.broadcast %21 : vector<1x256xbf16> to vector<4x256xbf16>
    %30 = arith.mulf %28, %29 : vector<4x256xbf16>
    %c0_5 = arith.constant 0 : index
    %c0_6 = arith.constant 0 : index
    %31 = vector.load %arg7[%c0_5, %c0_6] : memref<36x256xbf16, #tpu.memory_space<vmem>>, vector<4x256xbf16>
    tpu.vector_store %arg7[%c0_5, %c0_6], %30 {strides = array<i32>} : memref<36x256xbf16, #tpu.memory_space<vmem>>, vector<4x256xbf16>,
    %c0_7 = arith.constant 0 : index
    %c0_8 = arith.constant 0 : index
    %c16 = arith.constant 16 : index
    %32 = vector.load %arg1[%c0_7, %c0_8, %c16] : memref<1x4x320xbf16, #tpu.memory_space<vmem>>, vector<1x4x256xbf16>
    %33 = vector.shape_cast %32 : vector<1x4x256xbf16> to vector<4x256xbf16>
    %c4 = arith.constant 4 : index
    %c0_9 = arith.constant 0 : index
    %34 = vector.load %arg7[%c4, %c0_9] : memref<36x256xbf16, #tpu.memory_space<vmem>>, vector<4x256xbf16>
    tpu.vector_store %arg7[%c4, %c0_9], %33 {strides = array<i32>} : memref<36x256xbf16, #tpu.memory_space<vmem>>, vector<4x256xbf16>,
    %c0_10 = arith.constant 0 : index
    %c0_11 = arith.constant 0 : index
    %c17 = arith.constant 17 : index
    %35 = vector.load %arg1[%c0_10, %c0_11, %c17] : memref<1x4x320xbf16, #tpu.memory_space<vmem>>, vector<1x4x256xbf16>
    %36 = vector.shape_cast %35 : vector<1x4x256xbf16> to vector<4x256xbf16>
    %37 = vector.broadcast %26 : vector<1x256xbf16> to vector<4x256xbf16>
    %38 = arith.mulf %36, %37 : vector<4x256xbf16>
    %c8 = arith.constant 8 : index
    %c0_12 = arith.constant 0 : index
    %39 = vector.load %arg7[%c8, %c0_12] : memref<36x256xbf16, #tpu.memory_space<vmem>>, vector<4x256xbf16>
    tpu.vector_store %arg7[%c8, %c0_12], %38 {strides = array<i32>} : memref<36x256xbf16, #tpu.memory_space<vmem>>, vector<4x256xbf16>,
    %c0_13 = arith.constant 0 : index
    %c0_14 = arith.constant 0 : index
    %c31 = arith.constant 31 : index
    %40 = vector.load %arg1[%c0_13, %c0_14, %c31] : memref<1x4x320xbf16, #tpu.memory_space<vmem>>, vector<1x4x256xbf16>
    %41 = vector.shape_cast %40 : vector<1x4x256xbf16> to vector<4x256xbf16>
    %42 = vector.broadcast %21 : vector<1x256xbf16> to vector<4x256xbf16>
    %43 = arith.mulf %41, %42 : vector<4x256xbf16>
    %c12 = arith.constant 12 : index
    %c0_15 = arith.constant 0 : index
    %44 = vector.load %arg7[%c12, %c0_15] : memref<36x256xbf16, #tpu.memory_space<vmem>>, vector<4x256xbf16>
    tpu.vector_store %arg7[%c12, %c0_15], %43 {strides = array<i32>} : memref<36x256xbf16, #tpu.memory_space<vmem>>, vector<4x256xbf16>,
    %c0_16 = arith.constant 0 : index
    %c0_17 = arith.constant 0 : index
    %c32 = arith.constant 32 : index
    %45 = vector.load %arg1[%c0_16, %c0_17, %c32] : memref<1x4x320xbf16, #tpu.memory_space<vmem>>, vector<1x4x256xbf16>
    %46 = vector.shape_cast %45 : vector<1x4x256xbf16> to vector<4x256xbf16>
    %c16_18 = arith.constant 16 : index
    %c0_19 = arith.constant 0 : index
    %47 = vector.load %arg7[%c16_18, %c0_19] : memref<36x256xbf16, #tpu.memory_space<vmem>>, vector<4x256xbf16>
    tpu.vector_store %arg7[%c16_18, %c0_19], %46 {strides = array<i32>} : memref<36x256xbf16, #tpu.memory_space<vmem>>, vector<4x256xbf16>,
    %c0_20 = arith.constant 0 : index
    %c0_21 = arith.constant 0 : index
    %c33 = arith.constant 33 : index
    %48 = vector.load %arg1[%c0_20, %c0_21, %c33] : memref<1x4x320xbf16, #tpu.memory_space<vmem>>, vector<1x4x256xbf16>
    %49 = vector.shape_cast %48 : vector<1x4x256xbf16> to vector<4x256xbf16>
    %50 = vector.broadcast %26 : vector<1x256xbf16> to vector<4x256xbf16>
    %51 = arith.mulf %49, %50 : vector<4x256xbf16>
    %c20 = arith.constant 20 : index
    %c0_22 = arith.constant 0 : index
    %52 = vector.load %arg7[%c20, %c0_22] : memref<36x256xbf16, #tpu.memory_space<vmem>>, vector<4x256xbf16>
    tpu.vector_store %arg7[%c20, %c0_22], %51 {strides = array<i32>} : memref<36x256xbf16, #tpu.memory_space<vmem>>, vector<4x256xbf16>,
    %c0_23 = arith.constant 0 : index
    %c0_24 = arith.constant 0 : index
    %c47 = arith.constant 47 : index
    %53 = vector.load %arg1[%c0_23, %c0_24, %c47] : memref<1x4x320xbf16, #tpu.memory_space<vmem>>, vector<1x4x256xbf16>
    %54 = vector.shape_cast %53 : vector<1x4x256xbf16> to vector<4x256xbf16>
    %55 = vector.broadcast %21 : vector<1x256xbf16> to vector<4x256xbf16>
    %56 = arith.mulf %54, %55 : vector<4x256xbf16>
    %c24 = arith.constant 24 : index
    %c0_25 = arith.constant 0 : index
    %57 = vector.load %arg7[%c24, %c0_25] : memref<36x256xbf16, #tpu.memory_space<vmem>>, vector<4x256xbf16>
    tpu.vector_store %arg7[%c24, %c0_25], %56 {strides = array<i32>} : memref<36x256xbf16, #tpu.memory_space<vmem>>, vector<4x256xbf16>,
    %c0_26 = arith.constant 0 : index
    %c0_27 = arith.constant 0 : index
    %c48 = arith.constant 48 : index
    %58 = vector.load %arg1[%c0_26, %c0_27, %c48] : memref<1x4x320xbf16, #tpu.memory_space<vmem>>, vector<1x4x256xbf16>
    %59 = vector.shape_cast %58 : vector<1x4x256xbf16> to vector<4x256xbf16>
    %c28 = arith.constant 28 : index
    %c0_28 = arith.constant 0 : index
    %60 = vector.load %arg7[%c28, %c0_28] : memref<36x256xbf16, #tpu.memory_space<vmem>>, vector<4x256xbf16>
    tpu.vector_store %arg7[%c28, %c0_28], %59 {strides = array<i32>} : memref<36x256xbf16, #tpu.memory_space<vmem>>, vector<4x256xbf16>,
    %c0_29 = arith.constant 0 : index
    %c0_30 = arith.constant 0 : index
    %c49 = arith.constant 49 : index
    %61 = vector.load %arg1[%c0_29, %c0_30, %c49] : memref<1x4x320xbf16, #tpu.memory_space<vmem>>, vector<1x4x256xbf16>
    %62 = vector.shape_cast %61 : vector<1x4x256xbf16> to vector<4x256xbf16>
    %63 = vector.broadcast %26 : vector<1x256xbf16> to vector<4x256xbf16>
    %64 = arith.mulf %62, %63 : vector<4x256xbf16>
    %c32_31 = arith.constant 32 : index
    %c0_32 = arith.constant 0 : index
    %65 = vector.load %arg7[%c32_31, %c0_32] : memref<36x256xbf16, #tpu.memory_space<vmem>>, vector<4x256xbf16>
    tpu.vector_store %arg7[%c32_31, %c0_32], %64 {strides = array<i32>} : memref<36x256xbf16, #tpu.memory_space<vmem>>, vector<4x256xbf16>,
    %c0_33 = arith.constant 0 : index
    %c0_34 = arith.constant 0 : index
    %66 = vector.load %arg2[%c0_33, %c0_34] : memref<8x36xbf16, #tpu.memory_space<vmem>>, vector<8x36xbf16>
    %c0_35 = arith.constant 0 : index
    %c0_36 = arith.constant 0 : index
    %67 = vector.load %arg7[%c0_35, %c0_36] : memref<36x256xbf16, #tpu.memory_space<vmem>>, vector<36x256xbf16>
    %cst = arith.constant dense<0.000000e+00> : vector<8x256xf32>
    %68 = tpu.matmul %66, %67, %cst {dimension_numbers = #tpu.dot_dimension_numbers<[1], [0], [0], [1], [0, 0, 1, 1], [], []>} : vector<8x36xbf16>, vector<36x256xbf16>, vector<8x256xf32> -> vector<8x256xf32>
    %c0_37 = arith.constant 0 : index
    %c0_38 = arith.constant 0 : index
    %69 = vector.load %arg3[%c0_37, %c0_38] : memref<8x1xf32, #tpu.memory_space<vmem>>, vector<8x1xf32>
    %70 = vector.broadcast %69 : vector<8x1xf32> to vector<8x256xf32>
    %71 = arith.addf %68, %70 : vector<8x256xf32>
    %cst_39 = arith.constant 0.000000e+00 : f32
    %72 = vector.broadcast %cst_39 : f32 to vector<8x256xf32>
    %73 = arith.maximumf %71, %72 : vector<8x256xf32>
    %cst_40 = arith.constant 0.000000e+00 : bf16
    %74 = vector.broadcast %cst_40 : bf16 to vector<8x320xbf16>
    %c0_41 = arith.constant 0 : index
    %c0_42 = arith.constant 0 : index
    %75 = vector.load %arg8[%c0_41, %c0_42] : memref<8x320xbf16, #tpu.memory_space<vmem>>, vector<8x320xbf16>
    tpu.vector_store %arg8[%c0_41, %c0_42], %74 {strides = array<i32>} : memref<8x320xbf16, #tpu.memory_space<vmem>>, vector<8x320xbf16>,
    %76 = arith.truncf %73 : vector<8x256xf32> to vector<8x256xbf16>
    %c0_43 = arith.constant 0 : index
    %c32_44 = arith.constant 32 : index
    %77 = vector.load %arg8[%c0_43, %c32_44] : memref<8x320xbf16, #tpu.memory_space<vmem>>, vector<8x256xbf16>
    tpu.vector_store %arg8[%c0_43, %c32_44], %76 {strides = array<i32>} : memref<8x320xbf16, #tpu.memory_space<vmem>>, vector<8x256xbf16>,
    %c0_45 = arith.constant 0 : index
    %c15_46 = arith.constant 15 : index
    %78 = vector.load %arg8[%c0_45, %c15_46] : memref<8x320xbf16, #tpu.memory_space<vmem>>, vector<8x256xbf16>
    %79 = vector.broadcast %21 : vector<1x256xbf16> to vector<8x256xbf16>
    %80 = arith.mulf %78, %79 : vector<8x256xbf16>
    %c0_47 = arith.constant 0 : index
    %c0_48 = arith.constant 0 : index
    %81 = vector.load %arg9[%c0_47, %c0_48] : memref<72x256xbf16, #tpu.memory_space<vmem>>, vector<8x256xbf16>
    tpu.vector_store %arg9[%c0_47, %c0_48], %80 {strides = array<i32>} : memref<72x256xbf16, #tpu.memory_space<vmem>>, vector<8x256xbf16>,
    %c0_49 = arith.constant 0 : index
    %c16_50 = arith.constant 16 : index
    %82 = vector.load %arg8[%c0_49, %c16_50] : memref<8x320xbf16, #tpu.memory_space<vmem>>, vector<8x256xbf16>
    %c8_51 = arith.constant 8 : index
    %c0_52 = arith.constant 0 : index
    %83 = vector.load %arg9[%c8_51, %c0_52] : memref<72x256xbf16, #tpu.memory_space<vmem>>, vector<8x256xbf16>
    tpu.vector_store %arg9[%c8_51, %c0_52], %82 {strides = array<i32>} : memref<72x256xbf16, #tpu.memory_space<vmem>>, vector<8x256xbf16>,
    %c0_53 = arith.constant 0 : index
    %c17_54 = arith.constant 17 : index
    %84 = vector.load %arg8[%c0_53, %c17_54] : memref<8x320xbf16, #tpu.memory_space<vmem>>, vector<8x256xbf16>
    %85 = vector.broadcast %26 : vector<1x256xbf16> to vector<8x256xbf16>
    %86 = arith.mulf %84, %85 : vector<8x256xbf16>
    %c16_55 = arith.constant 16 : index
    %c0_56 = arith.constant 0 : index
    %87 = vector.load %arg9[%c16_55, %c0_56] : memref<72x256xbf16, #tpu.memory_space<vmem>>, vector<8x256xbf16>
    tpu.vector_store %arg9[%c16_55, %c0_56], %86 {strides = array<i32>} : memref<72x256xbf16, #tpu.memory_space<vmem>>, vector<8x256xbf16>,
    %c0_57 = arith.constant 0 : index
    %c31_58 = arith.constant 31 : index
    %88 = vector.load %arg8[%c0_57, %c31_58] : memref<8x320xbf16, #tpu.memory_space<vmem>>, vector<8x256xbf16>
    %89 = vector.broadcast %21 : vector<1x256xbf16> to vector<8x256xbf16>
    %90 = arith.mulf %88, %89 : vector<8x256xbf16>
    %c24_59 = arith.constant 24 : index
    %c0_60 = arith.constant 0 : index
    %91 = vector.load %arg9[%c24_59, %c0_60] : memref<72x256xbf16, #tpu.memory_space<vmem>>, vector<8x256xbf16>
    tpu.vector_store %arg9[%c24_59, %c0_60], %90 {strides = array<i32>} : memref<72x256xbf16, #tpu.memory_space<vmem>>, vector<8x256xbf16>,
    %c0_61 = arith.constant 0 : index
    %c32_62 = arith.constant 32 : index
    %92 = vector.load %arg8[%c0_61, %c32_62] : memref<8x320xbf16, #tpu.memory_space<vmem>>, vector<8x256xbf16>
    %c32_63 = arith.constant 32 : index
    %c0_64 = arith.constant 0 : index
    %93 = vector.load %arg9[%c32_63, %c0_64] : memref<72x256xbf16, #tpu.memory_space<vmem>>, vector<8x256xbf16>
    tpu.vector_store %arg9[%c32_63, %c0_64], %92 {strides = array<i32>} : memref<72x256xbf16, #tpu.memory_space<vmem>>, vector<8x256xbf16>,
    %c0_65 = arith.constant 0 : index
    %c33_66 = arith.constant 33 : index
    %94 = vector.load %arg8[%c0_65, %c33_66] : memref<8x320xbf16, #tpu.memory_space<vmem>>, vector<8x256xbf16>
    %95 = vector.broadcast %26 : vector<1x256xbf16> to vector<8x256xbf16>
    %96 = arith.mulf %94, %95 : vector<8x256xbf16>
    %c40 = arith.constant 40 : index
    %c0_67 = arith.constant 0 : index
    %97 = vector.load %arg9[%c40, %c0_67] : memref<72x256xbf16, #tpu.memory_space<vmem>>, vector<8x256xbf16>
    tpu.vector_store %arg9[%c40, %c0_67], %96 {strides = array<i32>} : memref<72x256xbf16, #tpu.memory_space<vmem>>, vector<8x256xbf16>,
    %c0_68 = arith.constant 0 : index
    %c47_69 = arith.constant 47 : index
    %98 = vector.load %arg8[%c0_68, %c47_69] : memref<8x320xbf16, #tpu.memory_space<vmem>>, vector<8x256xbf16>
    %99 = vector.broadcast %21 : vector<1x256xbf16> to vector<8x256xbf16>
    %100 = arith.mulf %98, %99 : vector<8x256xbf16>
    %c48_70 = arith.constant 48 : index
    %c0_71 = arith.constant 0 : index
    %101 = vector.load %arg9[%c48_70, %c0_71] : memref<72x256xbf16, #tpu.memory_space<vmem>>, vector<8x256xbf16>
    tpu.vector_store %arg9[%c48_70, %c0_71], %100 {strides = array<i32>} : memref<72x256xbf16, #tpu.memory_space<vmem>>, vector<8x256xbf16>,
    %c0_72 = arith.constant 0 : index
    %c48_73 = arith.constant 48 : index
    %102 = vector.load %arg8[%c0_72, %c48_73] : memref<8x320xbf16, #tpu.memory_space<vmem>>, vector<8x256xbf16>
    %c56 = arith.constant 56 : index
    %c0_74 = arith.constant 0 : index
    %103 = vector.load %arg9[%c56, %c0_74] : memref<72x256xbf16, #tpu.memory_space<vmem>>, vector<8x256xbf16>
    tpu.vector_store %arg9[%c56, %c0_74], %102 {strides = array<i32>} : memref<72x256xbf16, #tpu.memory_space<vmem>>, vector<8x256xbf16>,
    %c0_75 = arith.constant 0 : index
    %c49_76 = arith.constant 49 : index
    %104 = vector.load %arg8[%c0_75, %c49_76] : memref<8x320xbf16, #tpu.memory_space<vmem>>, vector<8x256xbf16>
    %105 = vector.broadcast %26 : vector<1x256xbf16> to vector<8x256xbf16>
    %106 = arith.mulf %104, %105 : vector<8x256xbf16>
    %c64 = arith.constant 64 : index
    %c0_77 = arith.constant 0 : index
    %107 = vector.load %arg9[%c64, %c0_77] : memref<72x256xbf16, #tpu.memory_space<vmem>>, vector<8x256xbf16>
    tpu.vector_store %arg9[%c64, %c0_77], %106 {strides = array<i32>} : memref<72x256xbf16, #tpu.memory_space<vmem>>, vector<8x256xbf16>,
    %c0_78 = arith.constant 0 : index
    %c0_79 = arith.constant 0 : index
    %108 = vector.load %arg4[%c0_78, %c0_79] : memref<8x72xbf16, #tpu.memory_space<vmem>>, vector<8x72xbf16>
    %c0_80 = arith.constant 0 : index
    %c0_81 = arith.constant 0 : index
    %109 = vector.load %arg9[%c0_80, %c0_81] : memref<72x256xbf16, #tpu.memory_space<vmem>>, vector<72x256xbf16>
    %cst_82 = arith.constant dense<0.000000e+00> : vector<8x256xf32>
    %110 = tpu.matmul %108, %109, %cst_82 {dimension_numbers = #tpu.dot_dimension_numbers<[1], [0], [0], [1], [0, 0, 1, 1], [], []>} : vector<8x72xbf16>, vector<72x256xbf16>, vector<8x256xf32> -> vector<8x256xf32>
    %c0_83 = arith.constant 0 : index
    %c0_84 = arith.constant 0 : index
    %111 = vector.load %arg5[%c0_83, %c0_84] : memref<8x1xf32, #tpu.memory_space<vmem>>, vector<8x1xf32>
    %112 = vector.broadcast %111 : vector<8x1xf32> to vector<8x256xf32>
    %113 = arith.addf %110, %112 : vector<8x256xf32>
    %cst_85 = arith.constant 0.000000e+00 : f32
    %114 = vector.broadcast %cst_85 : f32 to vector<8x256xf32>
    %115 = arith.maximumf %113, %114 : vector<8x256xf32>
    %c0_86 = arith.constant 0 : index
    %c0_87 = arith.constant 0 : index
    %c0_88 = arith.constant 0 : index
    %116 = vector.load %arg6[%c0_86, %c0_87, %c0_88] : memref<1x8x256xf32, #tpu.memory_space<vmem>>, vector<1x8x256xf32>
    %117 = vector.shape_cast %116 : vector<1x8x256xf32> to vector<8x256xf32>
    %118 = vector.shape_cast %115 : vector<8x256xf32> to vector<1x8x256xf32>
    tpu.vector_store %arg6[%c0_86, %c0_87, %c0_88], %118 {strides = array<i32>} : memref<1x8x256xf32, #tpu.memory_space<vmem>>, vector<1x8x256xf32>,
    return
  }
  func.func @transform_0(%arg0: i32) -> (i32, i32, i32) {
    %c0_i32 = arith.constant 0 : i32
    %c0_i32_0 = arith.constant 0 : i32
    %c0_i32_1 = arith.constant 0 : i32
    return %arg0, %c0_i32, %c0_i32_0 : i32, i32, i32
  }
  func.func @transform_1(%arg0: i32) -> (i32, i32) {
    %c0_i32 = arith.constant 0 : i32
    %c0_i32_0 = arith.constant 0 : i32
    %c0_i32_1 = arith.constant 0 : i32
    return %c0_i32, %c0_i32_0 : i32, i32
  }
  func.func @transform_2(%arg0: i32) -> (i32, i32) {
    %c0_i32 = arith.constant 0 : i32
    %c0_i32_0 = arith.constant 0 : i32
    %c0_i32_1 = arith.constant 0 : i32
    return %c0_i32, %c0_i32_0 : i32, i32
  }
  func.func @transform_3(%arg0: i32) -> (i32, i32) {
    %c0_i32 = arith.constant 0 : i32
    %c0_i32_0 = arith.constant 0 : i32
    %c0_i32_1 = arith.constant 0 : i32
    return %c0_i32, %c0_i32_0 : i32, i32
  }
  func.func @transform_4(%arg0: i32) -> (i32, i32) {
    %c0_i32 = arith.constant 0 : i32
    %c0_i32_0 = arith.constant 0 : i32
    %c0_i32_1 = arith.constant 0 : i32
    return %c0_i32, %c0_i32_0 : i32, i32
  }
  func.func @transform_5(%arg0: i32) -> (i32, i32, i32) {
    %c0_i32 = arith.constant 0 : i32
    %c0_i32_0 = arith.constant 0 : i32
    %c0_i32_1 = arith.constant 0 : i32
    return %arg0, %c0_i32, %c0_i32_0 : i32, i32, i32
  }
}

</mosaic_0001>

<llo_original>
// kernel: double_conv.1
$region0: #{double_conv.1}
  #allocation0 [shape = 'u32[]', space=smem, size = 0x4, offset = 0x4, fixed_abs, tag = 'smem constant byte address 0x4 - core index']
  #allocation1 [shape = 'u32[144,128]{1,0:T(1,128)}', space=vmem, size = 0x12000, scoped, tag = 'internal scratch']
  #allocation2 [shape = 'bf16[36,256]{1,0:T(8,128)(2,1)}', space=vmem, size = 0x5000, scoped, tag = 'scratch operand']
  #allocation3 [shape = 'bf16[8,320]{1,0:T(8,128)(2,1)}', space=vmem, size = 0x1800, scoped, tag = 'scratch operand']
  #allocation4 [shape = 'bf16[72,256]{1,0:T(8,128)(2,1)}', space=vmem, size = 0x9000, scoped, tag = 'scratch operand']
  %s0 = inlined_call_operand.vmem [shape: bf16[2,4,320], index: 0, kind: input, shape index: {}]
  %s1 = inlined_call_operand.vmem [shape: bf16[8,36], index: 1, kind: input, shape index: {}]
  %s2 = inlined_call_operand.vmem [shape: f32[8,1], index: 2, kind: input, shape index: {}]
  %s3 = inlined_call_operand.vmem [shape: bf16[8,72], index: 3, kind: input, shape index: {}]
  %s4 = inlined_call_operand.vmem [shape: f32[8,1], index: 4, kind: input, shape index: {}]
  %s5 = inlined_call_operand.vmem [shape: f32[2,8,256], index: 5, kind: output, shape index: {}]
  %s6 = sld [smem:[#allocation0]]
  $region53: #{double_conv.1} parent=0
    _
  %s8 = ssub.s32 1, %s6
  %s9 = scalar_select 0, %s8, %s6
  loop: start=0, step=1, limit=4
  $region2: #{double_conv.1} parent=0 // loop_pre_header
    _
  $region3: #{double_conv.1} parent=0 // loop_header
    %s11 = sphi 0, %s15
    %p12 = scmp.ge.s32.totalorder %s11, 4
    %s21 = sphi 0, %s23
    %s24 = sphi 0, %s21
    %s25 = sphi 0, %s24
    %s41 = sphi 0, %s25
    %s45 = sphi 0, %s45
    %s47 = sphi 0, %s45
    %s48 = sphi 0, %s47
    %s62 = sphi 0, %s48
    %s66 = sphi 0, %s66
    %s68 = sphi 0, %s66
    %s69 = sphi 0, %s68
    %s83 = sphi 0, %s69
    %s87 = sphi 0, %s87
    %s89 = sphi 0, %s87
    %s90 = sphi 0, %s89
    %s104 = sphi 0, %s90
    %s108 = sphi 0, %s108
    %s110 = sphi 0, %s108
    %s111 = sphi 0, %s110
    %s125 = sphi 0, %s111
    %s131 = sphi 0, %s133
    %s134 = sphi 0, %s131
    %s135 = sphi 0, %s134
    %s151 = sphi 0, %s135
  $region4: #{double_conv.1} parent=0 // loop_header_branch
    %14 = sbr.rel (%p12) target = $region8
  $region5: #{double_conv.1} parent=0 // loop_body
    %s16 = ssub.s32 %s11, 1
    %s17 = ssub.s32 %s11, 2
    %s18 = sadd.s32 %s11, 1
    %s19 = ssub.s32 %s11, %s18
    %p20 = scmp.eq.s32.totalorder %s19, 0
    %s22 = sadd.s32 %s21, 1
    %s23 = scalar_select %p20, %s21, %s22
    %p26 = pneg %p20
    %p27 = scmp.eq.s32.totalorder %s11, 1
    %p28 = por %p26, %p27
    %p29 = scmp.ne.s32.totalorder %s21, %s24
    %p30 = scmp.eq.s32.totalorder %s11, 0
    %p31 = por %p29, %p30
    %p32 = scmp.ne.s32.totalorder %s21, %s24
    %p33 = scmp.eq.s32.totalorder %s16, 1
    %p34 = por %p32, %p33
    %p35 = scmp.ne.s32.totalorder %s24, %s25
    %p36 = scmp.eq.s32.totalorder %s16, 0
    %p37 = por %p35, %p36
    %p38 = scmp.ne.s32.totalorder %s24, %s25
    %p39 = scmp.eq.s32.totalorder %s17, 1
    %p40 = por %p38, %p39
    %p42 = scmp.ne.s32.totalorder %s25, %s41
    %p43 = scmp.eq.s32.totalorder %s17, 0
    %p44 = por %p42, %p43
    %s46 = sadd.s32 %s45, 1
    %p49 = scmp.eq.s32.totalorder %s11, 1
    %p50 = scmp.ne.s32.totalorder %s45, %s47
    %p51 = scmp.eq.s32.totalorder %s11, 0
    %p52 = por %p50, %p51
    %p53 = scmp.ne.s32.totalorder %s45, %s47
    %p54 = scmp.eq.s32.totalorder %s16, 1
    %p55 = por %p53, %p54
    %p56 = scmp.ne.s32.totalorder %s47, %s48
    %p57 = scmp.eq.s32.totalorder %s16, 0
    %p58 = por %p56, %p57
    %p59 = scmp.ne.s32.totalorder %s47, %s48
    %p60 = scmp.eq.s32.totalorder %s17, 1
    %p61 = por %p59, %p60
    %p63 = scmp.ne.s32.totalorder %s48, %s62
    %p64 = scmp.eq.s32.totalorder %s17, 0
    %p65 = por %p63, %p64
    %s67 = sadd.s32 %s66, 1
    %p70 = scmp.eq.s32.totalorder %s11, 1
    %p71 = scmp.ne.s32.totalorder %s66, %s68
    %p72 = scmp.eq.s32.totalorder %s11, 0
    %p73 = por %p71, %p72
    %p74 = scmp.ne.s32.totalorder %s66, %s68
    %p75 = scmp.eq.s32.totalorder %s16, 1
    %p76 = por %p74, %p75
    %p77 = scmp.ne.s32.totalorder %s68, %s69
    %p78 = scmp.eq.s32.totalorder %s16, 0
    %p79 = por %p77, %p78
    %p80 = scmp.ne.s32.totalorder %s68, %s69
    %p81 = scmp.eq.s32.totalorder %s17, 1
    %p82 = por %p80, %p81
    %p84 = scmp.ne.s32.totalorder %s69, %s83
    %p85 = scmp.eq.s32.totalorder %s17, 0
    %p86 = por %p84, %p85
    %s88 = sadd.s32 %s87, 1
    %p91 = scmp.eq.s32.totalorder %s11, 1
    %p92 = scmp.ne.s32.totalorder %s87, %s89
    %p93 = scmp.eq.s32.totalorder %s11, 0
    %p94 = por %p92, %p93
    %p95 = scmp.ne.s32.totalorder %s87, %s89
    %p96 = scmp.eq.s32.totalorder %s16, 1
    %p97 = por %p95, %p96
    %p98 = scmp.ne.s32.totalorder %s89, %s90
    %p99 = scmp.eq.s32.totalorder %s16, 0
    %p100 = por %p98, %p99
    %p101 = scmp.ne.s32.totalorder %s89, %s90
    %p102 = scmp.eq.s32.totalorder %s17, 1
    %p103 = por %p101, %p102
    %p105 = scmp.ne.s32.totalorder %s90, %s104
    %p106 = scmp.eq.s32.totalorder %s17, 0
    %p107 = por %p105, %p106
    %s109 = sadd.s32 %s108, 1
    %p112 = scmp.eq.s32.totalorder %s11, 1
    %p113 = scmp.ne.s32.totalorder %s108, %s110
    %p114 = scmp.eq.s32.totalorder %s11, 0
    %p115 = por %p113, %p114
    %p116 = scmp.ne.s32.totalorder %s108, %s110
    %p117 = scmp.eq.s32.totalorder %s16, 1
    %p118 = por %p116, %p117
    %p119 = scmp.ne.s32.totalorder %s110, %s111
    %p120 = scmp.eq.s32.totalorder %s16, 0
    %p121 = por %p119, %p120
    %p122 = scmp.ne.s32.totalorder %s110, %s111
    %p123 = scmp.eq.s32.totalorder %s17, 1
    %p124 = por %p122, %p123
    %p126 = scmp.ne.s32.totalorder %s111, %s125
    %p127 = scmp.eq.s32.totalorder %s17, 0
    %p128 = por %p126, %p127
    %s129 = ssub.s32 %s11, %s18
    %p130 = scmp.eq.s32.totalorder %s129, 0
    %s132 = sadd.s32 %s131, 1
    %s133 = scalar_select %p130, %s131, %s132
    %p136 = pneg %p130
    %p137 = scmp.eq.s32.totalorder %s11, 1
    %p138 = por %p136, %p137
    %p139 = scmp.ne.s32.totalorder %s131, %s134
    %p140 = scmp.eq.s32.totalorder %s11, 0
    %p141 = por %p139, %p140
    %p142 = scmp.ne.s32.totalorder %s131, %s134
    %p143 = scmp.eq.s32.totalorder %s16, 1
    %p144 = por %p142, %p143
    %p145 = scmp.ne.s32.totalorder %s134, %s135
    %p146 = scmp.eq.s32.totalorder %s16, 0
    %p147 = por %p145, %p146
    %p148 = scmp.ne.s32.totalorder %s134, %s135
    %p149 = scmp.eq.s32.totalorder %s17, 1
    %p150 = por %p148, %p149
    %p152 = scmp.ne.s32.totalorder %s135, %s151
    %p153 = scmp.eq.s32.totalorder %s17, 0
    %p154 = por %p152, %p153
    %p155 = scmp.le.s32.totalorder 1, %s11
    %p156 = scmp.lt.s32.totalorder %s11, 3
    %p157 = pnand %p155, %p156
    %p158 = pneg %p157
    // Predicated region
    $region9: #{double_conv.1} parent=5 // pred_check
      _
    $region10: #{double_conv.1} parent=5 // pred_check_branch
      %160 = sbr.rel (%p157) target = $region12
    $region11: #{double_conv.1} parent=5 // pred_region
      %s161 = ssub.s32 %s11, 1
      // Predicated region
      $region13: #{double_conv.1} parent=11 // pred_check
        %p162 = pneg %p58
      $region14: #{double_conv.1} parent=11 // pred_check_branch
        %164 = sbr.rel (%p162) target = $region16
      $region15: #{double_conv.1} parent=11 // pred_region
        _
      $region16: #{double_conv.1} parent=11 // pred_fallthru
        _
      // Predicated region
      $region17: #{double_conv.1} parent=11 // pred_check
        %p165 = pneg %p79
      $region18: #{double_conv.1} parent=11 // pred_check_branch
        %167 = sbr.rel (%p165) target = $region20
      $region19: #{double_conv.1} parent=11 // pred_region
        _
      $region20: #{double_conv.1} parent=11 // pred_fallthru
        _
      // Predicated region
      $region21: #{double_conv.1} parent=11 // pred_check
        %p168 = pneg %p100
      $region22: #{double_conv.1} parent=11 // pred_check_branch
        %170 = sbr.rel (%p168) target = $region24
      $region23: #{double_conv.1} parent=11 // pred_region
        _
      $region24: #{double_conv.1} parent=11 // pred_fallthru
        _
      // Predicated region
      $region25: #{double_conv.1} parent=11 // pred_check
        %p171 = pneg %p121
      $region26: #{double_conv.1} parent=11 // pred_check_branch
        %173 = sbr.rel (%p171) target = $region28
      $region27: #{double_conv.1} parent=11 // pred_region
        _
      $region28: #{double_conv.1} parent=11 // pred_fallthru
        _
    $region12: #{double_conv.1} parent=5 // pred_fallthru
      _
    %p174 = scmp.lt.s32.totalorder %s11, 2
    // Predicated region
    $region29: #{double_conv.1} parent=5 // pred_check
      %p175 = pneg %p174
    $region30: #{double_conv.1} parent=5 // pred_check_branch
      %177 = sbr.rel (%p175) target = $region32
    $region31: #{double_conv.1} parent=5 // pred_region
      // Predicated region
      $region33: #{double_conv.1} parent=31 // pred_check
        %p178 = pneg %p31
      $region34: #{double_conv.1} parent=31 // pred_check_branch
        %180 = sbr.rel (%p178) target = $region36
      $region35: #{double_conv.1} parent=31 // pred_region
        %p181 = scmp.lt.s32.totalorder %s11, 1
        %s182 = scalar_select %p181, %s11, 1
        %s183 = smul.addr %s182, 3
        %s184 = smul.addr %s183, 2
        %s185 = scalar_lea.vmem %s0, %s184
      $region36: #{double_conv.1} parent=31 // pred_fallthru
        _
    $region32: #{double_conv.1} parent=5 // pred_fallthru
      _
    %p186 = scmp.le.s32.totalorder 1, %s11
    %p187 = scmp.lt.s32.totalorder %s11, 3
    %p188 = pnand %p186, %p187
    %p189 = pneg %p188
    // Predicated region
    $region37: #{double_conv.1} parent=5 // pred_check
      _
    $region38: #{double_conv.1} parent=5 // pred_check_branch
      %191 = sbr.rel (%p188) target = $region40
    $region39: #{double_conv.1} parent=5 // pred_region
      %s192 = ssub.s32 %s11, 1
      %p193 = scmp.lt.s32.totalorder %s16, 1
      %s194 = scalar_select %p193, %s16, 1
      %s195 = smul.addr %s194, 3
      %s196 = smul.addr %s195, 2
      %s197 = scalar_lea.vmem %s0, %s196
      %p198 = pneg %p37
      %p199 = pneg %p34
      %p200 = pneg %p58
      %p201 = pneg %p55
      %p202 = pneg %p79
      %p203 = pneg %p76
      %p204 = pneg %p100
      %p205 = pneg %p97
      %p206 = pneg %p121
      %p207 = pneg %p118
      %p208 = pneg %p147
      %p209 = pneg %p144
      %p210 = scmp.lt.s32.totalorder %s16, 1
      %s211 = scalar_select %p210, %s16, 1
      %s212 = smul.addr %s211, 2
      %s213 = smul.addr %s212, 8
      %s214 = scalar_lea.vmem %s5, %s213
      %p215 = scmp.lt.s32.totalorder %s16, 1
      %s216 = scalar_select %p215, %s16, 1
      %s217 = smul.addr %s216, 3
      %s218 = smul.addr %s217, 2
      %s219 = scalar_lea.vmem %s0, %s218
      %p220 = scmp.lt.s32.totalorder %s16, 1
      %s221 = scalar_select %p220, %s16, 1
      %s222 = smul.addr %s221, 2
      %s223 = smul.addr %s222, 8
      %s224 = scalar_lea.vmem %s5, %s223
      %v226 = vlaneseq
      %v227 = vand.u32 %v226, 127
      %v228 = vadd.s32 %v227, 128
      %vm229 = vcmp.lt.s32.totalorder %v227, 0
      %v230 = vsub.s32 0, %v227
      %v231 = vsel %vm229, %v230, %v227
      %v232 = vshrl.u32 %v231, 4
      %v233 = vand.u32 %v231, 15
      %v234 = vsub.s32 0, %v233
      %v235 = vsel %vm229, %v234, %v233
      %vm236 = vcmp.lt.s32.totalorder %v228, 0
      %v237 = vsub.s32 0, %v228
      %v238 = vsel %vm236, %v237, %v228
      %v239 = vshrl.u32 %v238, 4
      %v240 = vand.u32 %v238, 15
      %v241 = vsub.s32 0, %v240
      %v242 = vsel %vm236, %v241, %v240
      %vm243 = vcmp.ne.s32.totalorder %v235, 0
      %vm244 = vcmp.ne.s32.totalorder %v242, 0
      %vm245 = vcmp.lt.s32.totalorder %v235, 0
      %vm246 = vcmp.lt.s32.totalorder %v242, 0
      %vm247 = vmand %vm245, %vm243
      %vm248 = vmand %vm246, %vm244
      %v249 = vadd.s32 %v235, 16
      %v250 = vadd.s32 %v242, 16
      %v251 = vsel %vm247, %v249, %v235
      %v252 = vsel %vm248, %v250, %v242
      %vm253 = vcmp.ne.s32.totalorder %v251, 0
      %vm254 = vcmp.ne.s32.totalorder %v252, 0
      %v255 = vsel %vm253, 1, 0
      %v256 = vsel %vm254, 1, 0
      %v257 = vcvt.s32.f32 %v255
      %v258 = vcvt.s32.f32 %v256
      %v259 = vpack.c.bf16 %v257, %v257
      %v260 = vpack.c.bf16 %v258, %v258
      %vm261 = vcmp.ne.s32.totalorder %v251, 15
      %vm262 = vcmp.ne.s32.totalorder %v252, 15
      %v263 = vsel %vm261, 1, 0
      %v264 = vsel %vm262, 1, 0
      %v265 = vcvt.s32.f32 %v263
      %v266 = vcvt.s32.f32 %v264
      %v267 = vpack.c.bf16 %v265, %v265
      %v268 = vpack.c.bf16 %v266, %v266
      %v269 = vld [vmem:[%s219] sm:$0x3f]
      %v272 = vcombine.low %v259, %v260
      %v274 = vunpack.c.l.s4 1983009808
      %v275 = vunpack.c.0.s8 %v274
      %v276 = vlaneseq
      %v277 = vshrl.u32 %v276, 7
      %v278 = vsub.s32 %v275, %v277
      %v279 = vrot.slane %v272, %v278
      %280 = vrot.lane.b32.xlu0 %v279, 15
      %v281 = vpop.permute.xlu0 %280
      %v282 = vrot.slane %v281, 6
      %vm283 = vcmask 121856
      %v284 = vsel %vm283, %v282, %v281
      %v286 = vmul.bf16 %v269, %v284
      %v288 = vcombine.high %v286, %v286
      %v290 = vunpack.c.l.s4 1983009808
      %v291 = vunpack.c.0.s8 %v290
      %v292 = vlaneseq
      %v293 = vshrl.u32 %v292, 7
      %v294 = vsub.s32 %v291, %v293
      %v295 = vrot.slane %v286, %v294
      %v297 = vunpack.c.l.s4 1983009808
      %v298 = vunpack.c.0.s8 %v297
      %v299 = vlaneseq
      %v300 = vshrl.u32 %v299, 7
      %v301 = vsub.s32 %v298, %v300
      %v302 = vrot.slane %v288, %v301
      %303 = vrot.lane.b32.xlu0 %v295, 113
      %v304 = vpop.permute.xlu0 %303
      %305 = vrot.lane.b32.xlu0 %v302, 113
      %v306 = vpop.permute.xlu0 %305
      %v307 = vrot.slane %v304, 4
      %v308 = vrot.slane %v306, 4
      %vm309 = vcmask 1043456
      %v310 = vsel %vm309, %v307, %v308
      %vm311 = vcmask 924672
      %v312 = vsel %vm311, %v304, %v310
      %314 = vst [vmem:[#allocation2] sm:$0x33] %v312
      %v315 = vld [vmem:[%s219] sm:$0x3f]
      %v317 = vcombine.low %v315, %v315
      %v319 = vunpack.c.l.s4 1983009808
      %v320 = vunpack.c.0.s8 %v319
      %v321 = vlaneseq
      %v322 = vshrl.u32 %v321, 7
      %v323 = vsub.s32 %v320, %v322
      %v324 = vrot.slane %v317, %v323
      %v326 = vunpack.c.l.s4 1983009808
      %v327 = vunpack.c.0.s8 %v326
      %v328 = vlaneseq
      %v329 = vshrl.u32 %v328, 7
      %v330 = vsub.s32 %v327, %v329
      %v331 = vrot.slane %v315, %v330
      %332 = vrot.lane.b32.xlu0 %v324, 112
      %v333 = vpop.permute.xlu0 %332
      %334 = vrot.lane.b32.xlu0 %v331, 112
      %v335 = vpop.permute.xlu0 %334
      %v336 = vrot.slane %v333, 4
      %v337 = vrot.slane %v335, 4
      %v338 = vsel %vm309, %v336, %v337
      %vm339 = vcmask 916480
      %v340 = vsel %vm339, %v333, %v338
      %342 = vst [vmem:[#allocation2] sm:$0xcc] %v340
      %v343 = vld [vmem:[%s219] sm:$0x3f]
      %v346 = vcombine.low %v267, %v268
      %v348 = vunpack.c.l.s4 1983009808
      %v349 = vunpack.c.0.s8 %v348
      %v350 = vlaneseq
      %v351 = vshrl.u32 %v350, 7
      %v352 = vsub.s32 %v349, %v351
      %v353 = vrot.slane %v346, %v352
      %354 = vrot.lane.b32.xlu0 %v353, 17
      %v355 = vpop.permute.xlu0 %354
      %v356 = vrot.slane %v355, 6
      %vm357 = vcmask 138240
      %v358 = vsel %vm357, %v356, %v355
      %v360 = vmul.bf16 %v343, %v358
      %v362 = vcombine.high %v360, %v360
      %v364 = vunpack.c.l.s4 1983009808
      %v365 = vunpack.c.0.s8 %v364
      %v366 = vlaneseq
      %v367 = vshrl.u32 %v366, 7
      %v368 = vsub.s32 %v365, %v367
      %v369 = vrot.slane %v360, %v368
      %v371 = vunpack.c.l.s4 1983009808
      %v372 = vunpack.c.0.s8 %v371
      %v373 = vlaneseq
      %v374 = vshrl.u32 %v373, 7
      %v375 = vsub.s32 %v372, %v374
      %v376 = vrot.slane %v362, %v375
      %377 = vrot.lane.b32.xlu0 %v369, 111
      %v378 = vpop.permute.xlu0 %377
      %379 = vrot.lane.b32.xlu0 %v376, 111
      %v380 = vpop.permute.xlu0 %379
      %v381 = vrot.slane %v378, 4
      %v382 = vrot.slane %v380, 4
      %v383 = vsel %vm309, %v381, %v382
      %vm384 = vcmask 908288
      %v385 = vsel %vm384, %v378, %v383
      %387 = vst [vmem:[#allocation2 + $0x8] sm:$0x33] %v385
      %v388 = vld [vmem:[%s219] sm:$0x3f]
      %389 = vrot.lane.b32.xlu0 %v279, 31
      %v390 = vpop.permute.xlu0 %389
      %v391 = vrot.slane %v390, 6
      %vm392 = vcmask 252928
      %v393 = vsel %vm392, %v391, %v390
      %v395 = vmul.bf16 %v388, %v393
      %v397 = vcombine.low %v395, %v395
      %v399 = vunpack.c.l.s4 1983009808
      %v400 = vunpack.c.0.s8 %v399
      %v401 = vlaneseq
      %v402 = vshrl.u32 %v401, 7
      %v403 = vsub.s32 %v400, %v402
      %v404 = vrot.slane %v397, %v403
      %v406 = vunpack.c.l.s4 1983009808
      %v407 = vunpack.c.0.s8 %v406
      %v408 = vlaneseq
      %v409 = vshrl.u32 %v408, 7
      %v410 = vsub.s32 %v407, %v409
      %v411 = vrot.slane %v395, %v410
      %412 = vrot.lane.b32.xlu0 %v404, 97
      %v413 = vpop.permute.xlu0 %412
      %414 = vrot.lane.b32.xlu0 %v411, 97
      %v415 = vpop.permute.xlu0 %414
      %v416 = vrot.slane %v413, 4
      %v417 = vrot.slane %v415, 4
      %v418 = vsel %vm309, %v416, %v417
      %vm419 = vcmask 793600
      %v420 = vsel %vm419, %v413, %v418
      %422 = vst [vmem:[#allocation2 + $0x8] sm:$0xcc] %v420
      %v423 = vld [vmem:[%s219] sm:$0x3f]
      %v425 = vcombine.high %v423, %v423
      %v427 = vunpack.c.l.s4 1983009808
      %v428 = vunpack.c.0.s8 %v427
      %v429 = vlaneseq
      %v430 = vshrl.u32 %v429, 7
      %v431 = vsub.s32 %v428, %v430
      %v432 = vrot.slane %v423, %v431
      %v434 = vunpack.c.l.s4 1983009808
      %v435 = vunpack.c.0.s8 %v434
      %v436 = vlaneseq
      %v437 = vshrl.u32 %v436, 7
      %v438 = vsub.s32 %v435, %v437
      %v439 = vrot.slane %v425, %v438
      %440 = vrot.lane.b32.xlu0 %v432, 96
      %v441 = vpop.permute.xlu0 %440
      %442 = vrot.lane.b32.xlu0 %v439, 96
      %v443 = vpop.permute.xlu0 %442
      %v444 = vrot.slane %v441, 4
      %v445 = vrot.slane %v443, 4
      %v446 = vsel %vm309, %v444, %v445
      %vm447 = vcmask 785408
      %v448 = vsel %vm447, %v441, %v446
      %450 = vst [vmem:[#allocation2 + $0x10] sm:$0x33] %v448
      %v451 = vld [vmem:[%s219] sm:$0x3f]
      %452 = vrot.lane.b32.xlu0 %v353, 33
      %v453 = vpop.permute.xlu0 %452
      %v454 = vrot.slane %v453, 6
      %vm455 = vcmask 269312
      %v456 = vsel %vm455, %v454, %v453
      %v458 = vmul.bf16 %v451, %v456
      %v460 = vcombine.low %v458, %v458
      %v462 = vunpack.c.l.s4 1983009808
      %v463 = vunpack.c.0.s8 %v462
      %v464 = vlaneseq
      %v465 = vshrl.u32 %v464, 7
      %v466 = vsub.s32 %v463, %v465
      %v467 = vrot.slane %v460, %v466
      %v469 = vunpack.c.l.s4 1983009808
      %v470 = vunpack.c.0.s8 %v469
      %v471 = vlaneseq
      %v472 = vshrl.u32 %v471, 7
      %v473 = vsub.s32 %v470, %v472
      %v474 = vrot.slane %v458, %v473
      %475 = vrot.lane.b32.xlu0 %v467, 95
      %v476 = vpop.permute.xlu0 %475
      %477 = vrot.lane.b32.xlu0 %v474, 95
      %v478 = vpop.permute.xlu0 %477
      %v479 = vrot.slane %v476, 4
      %v480 = vrot.slane %v478, 4
      %v481 = vsel %vm309, %v479, %v480
      %vm482 = vcmask 777216
      %v483 = vsel %vm482, %v476, %v481
      %485 = vst [vmem:[#allocation2 + $0x10] sm:$0xcc] %v483
      %v486 = vld [vmem:[%s219] sm:$0x3f]
      %487 = vrot.lane.b32.xlu0 %v279, 47
      %v488 = vpop.permute.xlu0 %487
      %v489 = vrot.slane %v488, 6
      %vm490 = vcmask 384000
      %v491 = vsel %vm490, %v489, %v488
      %v493 = vmul.bf16 %v486, %v491
      %v495 = vcombine.high %v493, %v493
      %v497 = vunpack.c.l.s4 1983009808
      %v498 = vunpack.c.0.s8 %v497
      %v499 = vlaneseq
      %v500 = vshrl.u32 %v499, 7
      %v501 = vsub.s32 %v498, %v500
      %v502 = vrot.slane %v493, %v501
      %v504 = vunpack.c.l.s4 1983009808
      %v505 = vunpack.c.0.s8 %v504
      %v506 = vlaneseq
      %v507 = vshrl.u32 %v506, 7
      %v508 = vsub.s32 %v505, %v507
      %v509 = vrot.slane %v495, %v508
      %510 = vrot.lane.b32.xlu0 %v502, 81
      %v511 = vpop.permute.xlu0 %510
      %512 = vrot.lane.b32.xlu0 %v509, 81
      %v513 = vpop.permute.xlu0 %512
      %v514 = vrot.slane %v511, 4
      %v515 = vrot.slane %v513, 4
      %v516 = vsel %vm309, %v514, %v515
      %vm517 = vcmask 662528
      %v518 = vsel %vm517, %v511, %v516
      %520 = vst [vmem:[#allocation2 + $0x18] sm:$0x33] %v518
      %v521 = vld [vmem:[%s219] sm:$0x3f]
      %v523 = vcombine.low %v521, %v521
      %v525 = vunpack.c.l.s4 1983009808
      %v526 = vunpack.c.0.s8 %v525
      %v527 = vlaneseq
      %v528 = vshrl.u32 %v527, 7
      %v529 = vsub.s32 %v526, %v528
      %v530 = vrot.slane %v523, %v529
      %v532 = vunpack.c.l.s4 1983009808
      %v533 = vunpack.c.0.s8 %v532
      %v534 = vlaneseq
      %v535 = vshrl.u32 %v534, 7
      %v536 = vsub.s32 %v533, %v535
      %v537 = vrot.slane %v521, %v536
      %538 = vrot.lane.b32.xlu0 %v530, 80
      %v539 = vpop.permute.xlu0 %538
      %540 = vrot.lane.b32.xlu0 %v537, 80
      %v541 = vpop.permute.xlu0 %540
      %v542 = vrot.slane %v539, 4
      %v543 = vrot.slane %v541, 4
      %v544 = vsel %vm309, %v542, %v543
      %vm545 = vcmask 654336
      %v546 = vsel %vm545, %v539, %v544
      %548 = vst [vmem:[#allocation2 + $0x18] sm:$0xcc] %v546
      %v549 = vld [vmem:[%s219] sm:$0x3f]
      %550 = vrot.lane.b32.xlu0 %v353, 49
      %v551 = vpop.permute.xlu0 %550
      %v552 = vrot.slane %v551, 6
      %vm553 = vcmask 400384
      %v554 = vsel %vm553, %v552, %v551
      %v556 = vmul.bf16 %v549, %v554
      %v558 = vcombine.high %v556, %v556
      %v560 = vunpack.c.l.s4 1983009808
      %v561 = vunpack.c.0.s8 %v560
      %v562 = vlaneseq
      %v563 = vshrl.u32 %v562, 7
      %v564 = vsub.s32 %v561, %v563
      %v565 = vrot.slane %v556, %v564
      %v567 = vunpack.c.l.s4 1983009808
      %v568 = vunpack.c.0.s8 %v567
      %v569 = vlaneseq
      %v570 = vshrl.u32 %v569, 7
      %v571 = vsub.s32 %v568, %v570
      %v572 = vrot.slane %v558, %v571
      %573 = vrot.lane.b32.xlu0 %v565, 79
      %v574 = vpop.permute.xlu0 %573
      %575 = vrot.lane.b32.xlu0 %v572, 79
      %v576 = vpop.permute.xlu0 %575
      %v577 = vrot.slane %v574, 4
      %v578 = vrot.slane %v576, 4
      %v579 = vsel %vm309, %v577, %v578
      %vm580 = vcmask 646144
      %v581 = vsel %vm580, %v574, %v579
      %583 = vst [vmem:[#allocation2 + $0x20] sm:$0x33] %v581
      %v584 = vld [vmem:[%s1] sm:$0xf]
      %v585 = vld [vmem:[#allocation2] sm:$0xff]
      %v586 = vld [vmem:[#allocation2 + $0x8] sm:$0xff]
      %v587 = vld [vmem:[#allocation2 + $0x10] sm:$0xff]
      %v588 = vld [vmem:[#allocation2 + $0x18] sm:$0xff]
      %v589 = vld [vmem:[#allocation2 + $0x20] sm:$0x33]
      %v590 = vld [vmem:[%s2] sm:$0xff]
      %592 = vset.pattern.permute.xlu0 0
      %593 = vperm.xlu0 %592, %v590
      %v594 = vpop.permute.xlu0 %593
      %v601 = vunpack.c.l.b16 %v585
      %v602 = vunpack.c.h.b16 %v585
      %v603 = vunpack.c.l.b16 %v586
      %v604 = vunpack.c.h.b16 %v586
      %v605 = vunpack.c.l.b16 %v587
      %v606 = vunpack.c.h.b16 %v587
      %v607 = vunpack.c.l.b16 %v588
      %v608 = vunpack.c.h.b16 %v588
      %v609 = vunpack.c.l.b16 %v589
      %v610 = vunpack.c.h.b16 %v589
      %v611 = vpack.c.b16 %v603, %v601
      %v612 = vpack.c.b16 %v604, %v602
      %v613 = vpack.c.b16 %v607, %v605
      %v614 = vpack.c.b16 %v608, %v606
      %v615 = vpack.c.b16 %v609, %v609
      %v616 = vpack.c.b16 %v610, %v610
      %vm621 = vcmask 293888
      %v623 = vsel %vm621, %v584, 0
      %vm625 = vcmask 1041408
      %v627 = vsel %vm625, %v615, 0
      %v630 = vsel %vm625, %v616, 0
      %632 = vmatprep.subr.bf16.mxu0 0
      %633 = vmatpush1.bf16.msra.mxu0 0
      %634 = vmatprep.subr.bf16.mxu0 0
      %635 = vmatpush1.bf16.msra.mxu0 0
      %636 = vmatprep.subr.bf16.mxu0 0
      %637 = vmatpush1.bf16.msra.mxu0 0
      %638 = vmatprep.subr.bf16.mxu0 0
      %639 = vmatpush1.bf16.msra.mxu0 0
      %640 = vmatprep.subr.bf16.mxu0 0
      %641 = vmatpush1.bf16.msra.mxu0 0
      %642 = vmatprep.subr.bf16.mxu0 %v630
      %643 = vmatpush1.bf16.msra.mxu0 %v627
      %644 = vmatprep.subr.bf16.mxu0 %v614
      %645 = vmatpush1.bf16.msra.mxu0 %v613
      %646 = vmatprep.subr.bf16.mxu0 %v612
      %647 = vmatpush1.bf16.msra.mxu0 %v611
      %648 = vmatprep.subr.bf16.mxu0 0
      %649 = vmatpush2.bf16.msra.mxu0 0
      %650 = vmatprep.subr.bf16.mxu0 0
      %651 = vmatpush2.bf16.msra.mxu0 0
      %652 = vmatprep.subr.bf16.mxu0 0
      %653 = vmatpush2.bf16.msra.mxu0 0
      %654 = vmatprep.subr.bf16.mxu0 0
      %655 = vmatpush2.bf16.msra.mxu0 0
      %656 = vmatprep.subr.bf16.mxu0 0
      %657 = vmatpush2.bf16.msra.mxu0 0
      %658 = vmatprep.subr.bf16.mxu0 0
      %659 = vmatpush2.bf16.msra.mxu0 0
      %660 = vmatprep.subr.bf16.mxu0 0
      %661 = vmatpush2.bf16.msra.mxu0 0
      %662 = vmatprep.subr.bf16.mxu0 0
      %663 = vmatpush2.bf16.msra.mxu0 0
      %664 = vmatprep.mubr.bf16.mxu0 0
      %665 = vmatmul.mubr.bf16.gmra.mxu0 %v623
      %v666 = vpop.f32.mrf.mxu0
      %v667 = vadd.f32 %v594, %v666
      %v668 = vpop.f32.mrf.mxu0
      %v669 = vadd.f32 %v594, %v668
      %v670 = vpop.f32.mrf.mxu0
      %v671 = vpop.f32.mrf.mxu0
      %672 = vdwg.mxu0
      %v673 = vmax.f32 %v667, 0.0
      %v674 = vmax.f32 %v669, 0.0
      %675 = vst [vmem:[#allocation3] sm:$0xff] 0
      %vm676 = vcmask 519168
      %677 = vst.msk [vmem:[#allocation3 + $0x8] sm:$0xf] %vm676, 0
      %v678 = vpack.c.bf16 %v673, %v673
      %v679 = vpack.c.bf16 %v674, %v674
      %v682 = vunpack.c.l.b16 %v678
      %v683 = vunpack.c.l.b16 %v679
      %v684 = vpack.c.b16 %v683, %v682
      %685 = vrot.lane.b32.xlu0 %v684, 32
      %v686 = vpop.permute.xlu0 %685
      %v687 = vrot.slane %v686, 4
      %vm688 = vcmask 261120
      %v689 = vsel %vm688, %v687, %v686
      %vm692 = vcmask 1043712
      %vm693 = vcmask 1047556
      %vm694 = vmor %vm693, %vm692
      %695 = vst.msk [vmem:[#allocation3] sm:$0xff] %vm694, %v689
      %vm696 = vcmask 257024
      %697 = vst.msk [vmem:[#allocation3 + $0x8] sm:$0xf] %vm696, %v687
      %v698 = vld [vmem:[#allocation3] sm:$0xff]
      %v699 = vld [vmem:[#allocation3 + $0x8] sm:$0xf]
      %v700 = vunpack.c.l.b16 %v259
      %v701 = vunpack.c.l.b16 %v260
      %v702 = vpack.c.b16 %v701, %v700
      %703 = vrot.lane.b32.xlu0 %v702, 15
      %v704 = vpop.permute.xlu0 %703
      %v705 = vrot.slane %v704, 4
      %v706 = vsel %vm283, %v705, %v704
      %v709 = vmul.bf16 %v698, %v706
      %v710 = vmul.bf16 %v699, %v705
      %713 = vrot.lane.b32.xlu0 %v709, 113
      %v714 = vpop.permute.xlu0 %713
      %715 = vrot.lane.b32.xlu0 %v710, 113
      %v716 = vpop.permute.xlu0 %715
      %v717 = vrot.slane %v714, 4
      %v718 = vrot.slane %v716, 4
      %v719 = vsel %vm309, %v717, %v718
      %v720 = vsel %vm311, %v714, %v719
      %722 = vst [vmem:[#allocation4] sm:$0xff] %v720
      %v723 = vld [vmem:[#allocation3] sm:$0xff]
      %v724 = vld [vmem:[#allocation3 + $0x8] sm:$0xf]
      %727 = vrot.lane.b32.xlu0 %v723, 112
      %v728 = vpop.permute.xlu0 %727
      %729 = vrot.lane.b32.xlu0 %v724, 112
      %v730 = vpop.permute.xlu0 %729
      %v731 = vrot.slane %v728, 4
      %v732 = vrot.slane %v730, 4
      %v733 = vsel %vm309, %v731, %v732
      %v734 = vsel %vm339, %v728, %v733
      %736 = vst [vmem:[#allocation4 + $0x8] sm:$0xff] %v734
      %v737 = vld [vmem:[#allocation3] sm:$0xff]
      %v738 = vld [vmem:[#allocation3 + $0x8] sm:$0xf]
      %v739 = vunpack.c.l.b16 %v267
      %v740 = vunpack.c.l.b16 %v268
      %v741 = vpack.c.b16 %v740, %v739
      %742 = vrot.lane.b32.xlu0 %v741, 17
      %v743 = vpop.permute.xlu0 %742
      %v744 = vrot.slane %v743, 4
      %v745 = vsel %vm357, %v744, %v743
      %v748 = vmul.bf16 %v737, %v745
      %v749 = vmul.bf16 %v738, %v744
      %752 = vrot.lane.b32.xlu0 %v748, 111
      %v753 = vpop.permute.xlu0 %752
      %754 = vrot.lane.b32.xlu0 %v749, 111
      %v755 = vpop.permute.xlu0 %754
      %v756 = vrot.slane %v753, 4
      %v757 = vrot.slane %v755, 4
      %v758 = vsel %vm309, %v756, %v757
      %v759 = vsel %vm384, %v753, %v758
      %761 = vst [vmem:[#allocation4 + $0x10] sm:$0xff] %v759
      %v762 = vld [vmem:[#allocation3] sm:$0xff]
      %v763 = vld [vmem:[#allocation3 + $0x8] sm:$0xf]
      %764 = vrot.lane.b32.xlu0 %v702, 31
      %v765 = vpop.permute.xlu0 %764
      %v766 = vrot.slane %v765, 4
      %v767 = vsel %vm392, %v766, %v765
      %v770 = vmul.bf16 %v762, %v767
      %v771 = vmul.bf16 %v763, %v766
      %774 = vrot.lane.b32.xlu0 %v770, 97
      %v775 = vpop.permute.xlu0 %774
      %776 = vrot.lane.b32.xlu0 %v771, 97
      %v777 = vpop.permute.xlu0 %776
      %v778 = vrot.slane %v775, 4
      %v779 = vrot.slane %v777, 4
      %v780 = vsel %vm309, %v778, %v779
      %v781 = vsel %vm419, %v775, %v780
      %783 = vst [vmem:[#allocation4 + $0x18] sm:$0xff] %v781
      %v784 = vld [vmem:[#allocation3] sm:$0xff]
      %v785 = vld [vmem:[#allocation3 + $0x8] sm:$0xf]
      %788 = vrot.lane.b32.xlu0 %v784, 96
      %v789 = vpop.permute.xlu0 %788
      %790 = vrot.lane.b32.xlu0 %v785, 96
      %v791 = vpop.permute.xlu0 %790
      %v792 = vrot.slane %v789, 4
      %v793 = vrot.slane %v791, 4
      %v794 = vsel %vm309, %v792, %v793
      %v795 = vsel %vm447, %v789, %v794
      %797 = vst [vmem:[#allocation4 + $0x20] sm:$0xff] %v795
      %v798 = vld [vmem:[#allocation3] sm:$0xff]
      %v799 = vld [vmem:[#allocation3 + $0x8] sm:$0xf]
      %800 = vrot.lane.b32.xlu0 %v741, 33
      %v801 = vpop.permute.xlu0 %800
      %v802 = vrot.slane %v801, 4
      %v803 = vsel %vm455, %v802, %v801
      %v806 = vmul.bf16 %v798, %v803
      %v807 = vmul.bf16 %v799, %v802
      %810 = vrot.lane.b32.xlu0 %v806, 95
      %v811 = vpop.permute.xlu0 %810
      %812 = vrot.lane.b32.xlu0 %v807, 95
      %v813 = vpop.permute.xlu0 %812
      %v814 = vrot.slane %v811, 4
      %v815 = vrot.slane %v813, 4
      %v816 = vsel %vm309, %v814, %v815
      %v817 = vsel %vm482, %v811, %v816
      %819 = vst [vmem:[#allocation4 + $0x28] sm:$0xff] %v817
      %v820 = vld [vmem:[#allocation3] sm:$0xff]
      %v821 = vld [vmem:[#allocation3 + $0x8] sm:$0xf]
      %822 = vrot.lane.b32.xlu0 %v702, 47
      %v823 = vpop.permute.xlu0 %822
      %v824 = vrot.slane %v823, 4
      %v825 = vsel %vm490, %v824, %v823
      %v828 = vmul.bf16 %v820, %v825
      %v829 = vmul.bf16 %v821, %v824
      %832 = vrot.lane.b32.xlu0 %v828, 81
      %v833 = vpop.permute.xlu0 %832
      %834 = vrot.lane.b32.xlu0 %v829, 81
      %v835 = vpop.permute.xlu0 %834
      %v836 = vrot.slane %v833, 4
      %v837 = vrot.slane %v835, 4
      %v838 = vsel %vm309, %v836, %v837
      %v839 = vsel %vm517, %v833, %v838
      %841 = vst [vmem:[#allocation4 + $0x30] sm:$0xff] %v839
      %v842 = vld [vmem:[#allocation3] sm:$0xff]
      %v843 = vld [vmem:[#allocation3 + $0x8] sm:$0xf]
      %846 = vrot.lane.b32.xlu0 %v842, 80
      %v847 = vpop.permute.xlu0 %846
      %848 = vrot.lane.b32.xlu0 %v843, 80
      %v849 = vpop.permute.xlu0 %848
      %v850 = vrot.slane %v847, 4
      %v851 = vrot.slane %v849, 4
      %v852 = vsel %vm309, %v850, %v851
      %v853 = vsel %vm545, %v847, %v852
      %855 = vst [vmem:[#allocation4 + $0x38] sm:$0xff] %v853
      %v856 = vld [vmem:[#allocation3] sm:$0xff]
      %v857 = vld [vmem:[#allocation3 + $0x8] sm:$0xf]
      %858 = vrot.lane.b32.xlu0 %v741, 49
      %v859 = vpop.permute.xlu0 %858
      %v860 = vrot.slane %v859, 4
      %v861 = vsel %vm553, %v860, %v859
      %v864 = vmul.bf16 %v856, %v861
      %v865 = vmul.bf16 %v857, %v860
      %868 = vrot.lane.b32.xlu0 %v864, 79
      %v869 = vpop.permute.xlu0 %868
      %870 = vrot.lane.b32.xlu0 %v865, 79
      %v871 = vpop.permute.xlu0 %870
      %v872 = vrot.slane %v869, 4
      %v873 = vrot.slane %v871, 4
      %v874 = vsel %vm309, %v872, %v873
      %v875 = vsel %vm580, %v869, %v874
      %877 = vst [vmem:[#allocation4 + $0x40] sm:$0xff] %v875
      %v878 = vld [vmem:[%s3] sm:$0xf]
      %v879 = vld [vmem:[#allocation4] sm:$0xff]
      %v880 = vld [vmem:[#allocation4 + $0x8] sm:$0xff]
      %v881 = vld [vmem:[#allocation4 + $0x10] sm:$0xff]
      %v882 = vld [vmem:[#allocation4 + $0x18] sm:$0xff]
      %v883 = vld [vmem:[#allocation4 + $0x20] sm:$0xff]
      %v884 = vld [vmem:[#allocation4 + $0x28] sm:$0xff]
      %v885 = vld [vmem:[#allocation4 + $0x30] sm:$0xff]
      %v886 = vld [vmem:[#allocation4 + $0x38] sm:$0xff]
      %v887 = vld [vmem:[#allocation4 + $0x40] sm:$0xff]
      %v888 = vld [vmem:[%s4] sm:$0xff]
      %890 = vset.pattern.permute.xlu0 0
      %891 = vperm.xlu0 %890, %v888
      %v892 = vpop.permute.xlu0 %891
      %v903 = vunpack.c.l.b16 %v879
      %v904 = vunpack.c.h.b16 %v879
      %v905 = vunpack.c.l.b16 %v880
      %v906 = vunpack.c.h.b16 %v880
      %v907 = vunpack.c.l.b16 %v881
      %v908 = vunpack.c.h.b16 %v881
      %v909 = vunpack.c.l.b16 %v882
      %v910 = vunpack.c.h.b16 %v882
      %v911 = vunpack.c.l.b16 %v883
      %v912 = vunpack.c.h.b16 %v883
      %v913 = vunpack.c.l.b16 %v884
      %v914 = vunpack.c.h.b16 %v884
      %v915 = vunpack.c.l.b16 %v885
      %v916 = vunpack.c.h.b16 %v885
      %v917 = vunpack.c.l.b16 %v886
      %v918 = vunpack.c.h.b16 %v886
      %v919 = vunpack.c.l.b16 %v887
      %v920 = vunpack.c.h.b16 %v887
      %v921 = vpack.c.b16 %v905, %v903
      %v922 = vpack.c.b16 %v906, %v904
      %v923 = vpack.c.b16 %v909, %v907
      %v924 = vpack.c.b16 %v910, %v908
      %v925 = vpack.c.b16 %v913, %v911
      %v926 = vpack.c.b16 %v914, %v912
      %v927 = vpack.c.b16 %v917, %v915
      %v928 = vpack.c.b16 %v918, %v916
      %v929 = vpack.c.b16 %v919, %v919
      %v930 = vpack.c.b16 %v920, %v920
      %vm939 = vcmask 588800
      %v941 = vsel %vm939, %v878, 0
      %vm943 = vcmask 1043456
      %v945 = vsel %vm943, %v929, 0
      %v948 = vsel %vm943, %v930, 0
      %950 = vmatprep.subr.bf16.mxu0 0
      %951 = vmatpush1.bf16.msra.mxu0 0
      %952 = vmatprep.subr.bf16.mxu0 0
      %953 = vmatpush1.bf16.msra.mxu0 0
      %954 = vmatprep.subr.bf16.mxu0 0
      %955 = vmatpush1.bf16.msra.mxu0 0
      %956 = vmatprep.subr.bf16.mxu0 %v948
      %957 = vmatpush1.bf16.msra.mxu0 %v945
      %958 = vmatprep.subr.bf16.mxu0 %v928
      %959 = vmatpush1.bf16.msra.mxu0 %v927
      %960 = vmatprep.subr.bf16.mxu0 %v926
      %961 = vmatpush1.bf16.msra.mxu0 %v925
      %962 = vmatprep.subr.bf16.mxu0 %v924
      %963 = vmatpush1.bf16.msra.mxu0 %v923
      %964 = vmatprep.subr.bf16.mxu0 %v922
      %965 = vmatpush1.bf16.msra.mxu0 %v921
      %966 = vmatprep.subr.bf16.mxu0 0
      %967 = vmatpush2.bf16.msra.mxu0 0
      %968 = vmatprep.subr.bf16.mxu0 0
      %969 = vmatpush2.bf16.msra.mxu0 0
      %970 = vmatprep.subr.bf16.mxu0 0
      %971 = vmatpush2.bf16.msra.mxu0 0
      %972 = vmatprep.subr.bf16.mxu0 0
      %973 = vmatpush2.bf16.msra.mxu0 0
      %974 = vmatprep.subr.bf16.mxu0 0
      %975 = vmatpush2.bf16.msra.mxu0 0
      %976 = vmatprep.subr.bf16.mxu0 0
      %977 = vmatpush2.bf16.msra.mxu0 0
      %978 = vmatprep.subr.bf16.mxu0 0
      %979 = vmatpush2.bf16.msra.mxu0 0
      %980 = vmatprep.subr.bf16.mxu0 0
      %981 = vmatpush2.bf16.msra.mxu0 0
      %982 = vmatprep.mubr.bf16.mxu0 0
      %983 = vmatmul.mubr.bf16.gmra.mxu0 %v941
      %v984 = vpop.f32.mrf.mxu0
      %v985 = vadd.f32 %v892, %v984
      %v986 = vpop.f32.mrf.mxu0
      %v987 = vadd.f32 %v892, %v986
      %v988 = vpop.f32.mrf.mxu0
      %v989 = vpop.f32.mrf.mxu0
      %990 = vdwg.mxu0
      %v991 = vmax.f32 %v985, 0.0
      %v992 = vmax.f32 %v987, 0.0
      %993 = vst [vmem:[%s224] sm:$0xff] %v991
      %994 = vst [vmem:[%s224 + $0x8] sm:$0xff] %v992
      %p995 = scmp.lt.s32.totalorder %s16, 1
      %s996 = scalar_select %p995, %s16, 1
      %s997 = smul.addr %s996, 2
      %s998 = smul.addr %s997, 8
      %s999 = scalar_lea.vmem %s5, %s998
      // Predicated region
      $region41: #{double_conv.1} parent=39 // pred_check
        %p1000 = pneg %p144
      $region42: #{double_conv.1} parent=39 // pred_check_branch
        %1002 = sbr.rel (%p1000) target = $region44
      $region43: #{double_conv.1} parent=39 // pred_region
        _
      $region44: #{double_conv.1} parent=39 // pred_fallthru
        _
    $region40: #{double_conv.1} parent=5 // pred_fallthru
      _
    %p1003 = scmp.le.s32.totalorder 2, %s11
    // Predicated region
    $region45: #{double_conv.1} parent=5 // pred_check
      %p1004 = pneg %p1003
    $region46: #{double_conv.1} parent=5 // pred_check_branch
      %1006 = sbr.rel (%p1004) target = $region48
    $region47: #{double_conv.1} parent=5 // pred_region
      %s1007 = ssub.s32 %s11, 2
      // Predicated region
      $region49: #{double_conv.1} parent=47 // pred_check
        %p1008 = pneg %p150
      $region50: #{double_conv.1} parent=47 // pred_check_branch
        %1010 = sbr.rel (%p1008) target = $region52
      $region51: #{double_conv.1} parent=47 // pred_region
        %p1011 = scmp.lt.s32.totalorder %s17, 1
        %s1012 = scalar_select %p1011, %s17, 1
        %s1013 = smul.addr %s1012, 2
        %s1014 = smul.addr %s1013, 8
        %s1015 = scalar_lea.vmem %s5, %s1014
      $region52: #{double_conv.1} parent=47 // pred_fallthru
        _
    $region48: #{double_conv.1} parent=5 // pred_fallthru
      _
  $region6: #{double_conv.1} parent=0 // loop_footer
    %s15 = sadd.s32 1, %s11
  $region7: #{double_conv.1} parent=0 // loop_footer_branch
    %10 = sbr.rel target = $region3
  $region8: #{double_conv.1} parent=0 // loop_exit
    _

</llo_original>
